<compile_context>
chip_gen: v7x
topology: tpu7x:2x2x1
jax: 0.10.0
libtpu: 0.0.40
codegen_flags: <defaults>
</compile_context>

<pallas_src>
import jax
import jax.numpy as jnp
from jax.experimental import pallas as pl
from jax.experimental.pallas import tpu as pltpu


def _round_up(x, m):
    return (x + m - 1) // m * m


def _cdiv(a, b):
    return (a + b - 1) // b


# ----------------------------------------------------------------------------
# Kernels
# ----------------------------------------------------------------------------
def _fused_linear_relu_kernel(x_ref, w_ref, b_ref, o_ref):
    # Single K step: full contraction + bias + ReLU, one lane-dense f32 store.
    acc = jnp.dot(x_ref[...], w_ref[...], preferred_element_type=jnp.float32)
    o_ref[...] = jnp.maximum(acc + b_ref[...], 0.0)


def _acc_linear_relu_kernel(x_ref, w_ref, b_ref, o_ref):
    # K-tiled fallback: accumulate directly into the resident f32 output block
    # (its block index is constant across k); bias + ReLU fused at the last k.
    k = pl.program_id(2)

    @pl.when(k == 0)
    def _():
        o_ref[...] = jnp.zeros_like(o_ref)

    o_ref[...] += jnp.dot(x_ref[...], w_ref[...],
                          preferred_element_type=jnp.float32)

    @pl.when(k == pl.num_programs(2) - 1)
    def _():
        o_ref[...] = jnp.maximum(o_ref[...] + b_ref[...], 0.0)


# ----------------------------------------------------------------------------
# One-time parameter prep (hoisted out of the per-call path)
# ----------------------------------------------------------------------------
def prepare_classifier_params(w, b):
    """Transpose, pad to lane-aligned (Kp, Np), cast weight to bf16; bias to
    a (1, Np) f32 row. Do this once at init, not per forward call."""
    num_classes, in_features = w.shape
    kp = _round_up(in_features, 128)
    np_ = _round_up(num_classes, 128)
    w_packed = jnp.pad(jnp.asarray(w).T.astype(jnp.bfloat16),
                       ((0, kp - in_features), (0, np_ - num_classes)))
    b_packed = jnp.pad(jnp.asarray(b).astype(jnp.float32),
                       (0, np_ - num_classes)).reshape(1, np_)
    return w_packed, b_packed


# ----------------------------------------------------------------------------
# Tiling helpers + forward wrapper
# ----------------------------------------------------------------------------
def _choose_tm(m):
    mp16 = _round_up(max(m, 1), 16)
    budget = mp16 + mp16 // 4            # allow <= ~25% padding waste
    tm = 16
    for cand in (32, 64, 128, 256, 512):
        if _round_up(m, cand) <= budget:
            tm = cand
    # v7x megacore: prefer >=2 parallel M blocks when the batch is big enough.
    if _round_up(m, tm) // tm < 2 and tm >= 32 and m > tm // 2:
        tm //= 2
    return tm


def classifier_forward(x, w_packed, b_packed, num_classes):
    """PyTorch Classifier.forward (eval mode): relu(Linear(x.view(N, -1)))."""
    m = x.shape[0]
    x2 = x.reshape(m, -1).astype(jnp.bfloat16)   # single reshape -> bf16 cast
    k = x2.shape[1]
    kp_w, np_ = w_packed.shape
    kp128 = _round_up(k, 128)
    assert kp_w == kp128, (kp_w, kp128)

    tn = np_ if np_ <= 512 else 128
    tm = _choose_tm(m)
    mp = _round_up(m, tm)

    # Prefer a single K step (weight resident in VMEM, no accumulation) when
    # the working set is comfortably within VMEM; otherwise tile K minimally.
    single_k_bytes = 2 * tm * kp128 * 2 + kp128 * tn * 2 + 2 * tm * tn * 4
    if single_k_bytes <= (20 << 20):
        tk, kk = kp128, 1
    else:
        kk = _cdiv(kp128, 2048)
        tk = _cdiv(kp128, kk * 128) * 128
        kk = _cdiv(kp128, tk)
    kp = tk * kk

    xp = jnp.pad(x2, ((0, mp - m), (0, kp - k)))
    wp = w_packed if kp == kp_w else jnp.pad(w_packed, ((0, kp - kp_w), (0, 0)))

    est = 2 * tm * tk * 2 + 2 * tk * tn * 2 + 2 * tm * tn * 4 + 2 * tn * 4
    vmem_limit = int(min(48 << 20, max(32 << 20, 2 * est)))

    kernel = _fused_linear_relu_kernel if kk == 1 else _acc_linear_relu_kernel

    out = pl.pallas_call(
        kernel,
        out_shape=jax.ShapeDtypeStruct((mp, np_), jnp.float32),
        grid_spec=pltpu.PrefetchScalarGridSpec(
            num_scalar_prefetch=0,
            grid=(mp // tm, np_ // tn, kk),
            in_specs=[
                pl.BlockSpec((tm, tk), lambda i, j, kx: (i, kx)),
                pl.BlockSpec((tk, tn), lambda i, j, kx: (kx, j)),
                pl.BlockSpec((1, tn), lambda i, j, kx: (0, j)),
            ],
            out_specs=pl.BlockSpec((tm, tn), lambda i, j, kx: (i, j)),
        ),
        compiler_params=pltpu.CompilerParams(
            dimension_semantics=("parallel", "parallel", "arbitrary"),
            vmem_limit_bytes=vmem_limit),
    )(xp, wp, b_packed)

    # TODO(synk): nn.Dropout training-mode random mask intentionally omitted
    # (eval-mode forward => identity).
    return out[:m, :num_classes]


# ----------------------------------------------------------------------------
# Driver
# ----------------------------------------------------------------------------
if __name__ == "__main__":
    key = jax.random.PRNGKey(0)
    kx, kw, kb = jax.random.split(key, 3)

    # Small shapes implied by the module: a feature map that gets flattened
    # (view) into in_features, then classified into num_classes logits.
    batch, c, h, wdim = 6, 2, 24, 24
    in_features = c * h * wdim            # 1152
    num_classes = 10

    x = jax.random.normal(kx, (batch, c, h, wdim), jnp.float32)
    w = jax.random.normal(kw, (num_classes, in_features), jnp.float32)
    w = w * (in_features ** -0.5)
    b = jax.random.normal(kb, (num_classes,), jnp.float32) * 0.02

    # One-time parameter prep (hoisted out of the per-call path).
    w_packed, b_packed = prepare_classifier_params(w, b)

    fwd = jax.jit(classifier_forward, static_argnums=(3,))
    out = jax.block_until_ready(fwd(x, w_packed, b_packed, num_classes))

    assert out.shape == (batch, num_classes) and out.dtype == jnp.float32

    # Sanity check against plain-JAX reference (generous tol: bf16 operands).
    ref = jnp.maximum(x.reshape(batch, -1) @ w.T + b, 0.0)
    assert jnp.allclose(out, ref, rtol=5e-2, atol=5e-2), (
        float(jnp.max(jnp.abs(out - ref))))

    print("KERNEL_OK")
</pallas_src>

<mosaic_0001>
module attributes {stable_mosaic.version = 11 : i64} {
  func.func @_fused_linear_relu_kernel(%arg0: i32, %arg1: i32, %arg2: i32, %arg3: memref<16x1152xbf16, #tpu.memory_space<vmem>>, %arg4: memref<1152x128xbf16, #tpu.memory_space<vmem>>, %arg5: memref<1x128xf32, #tpu.memory_space<vmem>>, %arg6: memref<16x128xf32, #tpu.memory_space<vmem>>) attributes {dimension_semantics = [#tpu.dimension_semantics<parallel>, #tpu.dimension_semantics<parallel>, #tpu.dimension_semantics<arbitrary>], iteration_bounds = array<i64: 1, 1, 1>, scalar_prefetch = 0 : i64, scratch_operands = 0 : i64, tpu.core_type = #tpu.core_type<tc>, window_params = [{transform_indices = @transform_0, window_bounds = array<i64: 16, 1152>}, {transform_indices = @transform_1, window_bounds = array<i64: 1152, 128>}, {transform_indices = @transform_2, window_bounds = array<i64: 1, 128>}, {transform_indices = @transform_3, window_bounds = array<i64: 16, 128>}]} {
    %c0 = arith.constant 0 : index
    %c0_0 = arith.constant 0 : index
    %0 = vector.load %arg3[%c0, %c0_0] : memref<16x1152xbf16, #tpu.memory_space<vmem>>, vector<16x1152xbf16>
    %c0_1 = arith.constant 0 : index
    %c0_2 = arith.constant 0 : index
    %1 = vector.load %arg4[%c0_1, %c0_2] : memref<1152x128xbf16, #tpu.memory_space<vmem>>, vector<1152x128xbf16>
    %cst = arith.constant dense<0.000000e+00> : vector<16x128xf32>
    %2 = tpu.matmul %0, %1, %cst {dimension_numbers = #tpu.dot_dimension_numbers<[1], [0], [0], [1], [0, 0, 1, 1], [], []>} : vector<16x1152xbf16>, vector<1152x128xbf16>, vector<16x128xf32> -> vector<16x128xf32>
    %c0_3 = arith.constant 0 : index
    %c0_4 = arith.constant 0 : index
    %3 = vector.load %arg5[%c0_3, %c0_4] : memref<1x128xf32, #tpu.memory_space<vmem>>, vector<1x128xf32>
    %4 = vector.broadcast %3 : vector<1x128xf32> to vector<16x128xf32>
    %5 = arith.addf %2, %4 : vector<16x128xf32>
    %cst_5 = arith.constant 0.000000e+00 : f32
    %6 = vector.broadcast %cst_5 : f32 to vector<16x128xf32>
    %7 = arith.maximumf %5, %6 : vector<16x128xf32>
    %c0_6 = arith.constant 0 : index
    %c0_7 = arith.constant 0 : index
    %8 = vector.load %arg6[%c0_6, %c0_7] : memref<16x128xf32, #tpu.memory_space<vmem>>, vector<16x128xf32>
    tpu.vector_store %arg6[%c0_6, %c0_7], %7 {strides = array<i32>} : memref<16x128xf32, #tpu.memory_space<vmem>>, vector<16x128xf32>,
    return
  }
  func.func @transform_0(%arg0: i32, %arg1: i32, %arg2: i32) -> (i32, i32) {
    %c0_i32 = arith.constant 0 : i32
    return %arg0, %arg2 : i32, i32
  }
  func.func @transform_1(%arg0: i32, %arg1: i32, %arg2: i32) -> (i32, i32) {
    %c0_i32 = arith.constant 0 : i32
    return %arg2, %arg1 : i32, i32
  }
  func.func @transform_2(%arg0: i32, %arg1: i32, %arg2: i32) -> (i32, i32) {
    %c0_i32 = arith.constant 0 : i32
    %c0_i32_0 = arith.constant 0 : i32
    return %c0_i32, %arg1 : i32, i32
  }
  func.func @transform_3(%arg0: i32, %arg1: i32, %arg2: i32) -> (i32, i32) {
    %c0_i32 = arith.constant 0 : i32
    return %arg0, %arg1 : i32, i32
  }
}

</mosaic_0001>

<llo_original>
// kernel: classifier_forward.1
$region0: #{classifier_forward.1}
  #allocation0 [shape = 'u32[]', space=smem, size = 0x4, offset = 0x4, fixed_abs, tag = 'smem constant byte address 0x4 - core index']
  #allocation1 [shape = 'u32[144,128]{1,0:T(1,128)}', space=vmem, size = 0x12000, scoped, tag = 'internal scratch']
  %s0 = inlined_call_operand.vmem [shape: bf16[16,1152], index: 0, kind: input, shape index: {}]
  %s1 = inlined_call_operand.vmem [shape: bf16[1152,128], index: 1, kind: input, shape index: {}]
  %s2 = inlined_call_operand.vmem [shape: f32[1,128], index: 2, kind: input, shape index: {}]
  %s3 = inlined_call_operand.vmem [shape: f32[16,128], index: 3, kind: output, shape index: {}]
  %s4 = sld [smem:[#allocation0]]
  $region22: #{classifier_forward.1} parent=0
    _
  %s6 = ssub.s32 1, %s4
  %s7 = scalar_select 0, %s6, %s4
  // Predicated region
  $region2: #{classifier_forward.1} parent=0 // pred_check
    _
  $region3: #{classifier_forward.1} parent=0 // pred_check_branch
    %9 = sbr.rel (0) target = $region5
  $region4: #{classifier_forward.1} parent=0 // pred_region
    _
  $region5: #{classifier_forward.1} parent=0 // pred_fallthru
    _
  // Predicated region
  $region6: #{classifier_forward.1} parent=0 // pred_check
    _
  $region7: #{classifier_forward.1} parent=0 // pred_check_branch
    %11 = sbr.rel (0) target = $region9
  $region8: #{classifier_forward.1} parent=0 // pred_region
    _
  $region9: #{classifier_forward.1} parent=0 // pred_fallthru
    _
  // Predicated region
  $region10: #{classifier_forward.1} parent=0 // pred_check
    _
  $region11: #{classifier_forward.1} parent=0 // pred_check_branch
    %13 = sbr.rel (0) target = $region13
  $region12: #{classifier_forward.1} parent=0 // pred_region
    _
  $region13: #{classifier_forward.1} parent=0 // pred_fallthru
    _
  %v15 = vld [vmem:[%s0] sm:$0xff]
  %v16 = vld [vmem:[%s0 + $0x8] sm:$0xff]
  %v17 = vld [vmem:[%s0 + $0x10] sm:$0xff]
  %v18 = vld [vmem:[%s0 + $0x18] sm:$0xff]
  %v19 = vld [vmem:[%s0 + $0x20] sm:$0xf]
  %v20 = vld [vmem:[%s0 + $0x24] sm:$0xff]
  %v21 = vld [vmem:[%s0 + $0x2c] sm:$0xff]
  %v22 = vld [vmem:[%s0 + $0x34] sm:$0xff]
  %v23 = vld [vmem:[%s0 + $0x3c] sm:$0xff]
  %v24 = vld [vmem:[%s0 + $0x44] sm:$0xf]
  %v25 = vld [vmem:[%s1] sm:$0xf]
  %v26 = vld [vmem:[%s1 + $0x4] sm:$0xf]
  %v27 = vld [vmem:[%s1 + $0x8] sm:$0xf]
  %v28 = vld [vmem:[%s1 + $0xc] sm:$0xf]
  %v29 = vld [vmem:[%s1 + $0x10] sm:$0xf]
  %v30 = vld [vmem:[%s1 + $0x14] sm:$0xf]
  %v31 = vld [vmem:[%s1 + $0x18] sm:$0xf]
  %v32 = vld [vmem:[%s1 + $0x1c] sm:$0xf]
  %v33 = vld [vmem:[%s1 + $0x20] sm:$0xf]
  %v34 = vld [vmem:[%s1 + $0x24] sm:$0xf]
  %v35 = vld [vmem:[%s1 + $0x28] sm:$0xf]
  %v36 = vld [vmem:[%s1 + $0x2c] sm:$0xf]
  %v37 = vld [vmem:[%s1 + $0x30] sm:$0xf]
  %v38 = vld [vmem:[%s1 + $0x34] sm:$0xf]
  %v39 = vld [vmem:[%s1 + $0x38] sm:$0xf]
  %v40 = vld [vmem:[%s1 + $0x3c] sm:$0xf]
  %v41 = vld [vmem:[%s1 + $0x40] sm:$0xf]
  %v42 = vld [vmem:[%s1 + $0x44] sm:$0xf]
  %v43 = vld [vmem:[%s1 + $0x48] sm:$0xf]
  %v44 = vld [vmem:[%s1 + $0x4c] sm:$0xf]
  %v45 = vld [vmem:[%s1 + $0x50] sm:$0xf]
  %v46 = vld [vmem:[%s1 + $0x54] sm:$0xf]
  %v47 = vld [vmem:[%s1 + $0x58] sm:$0xf]
  %v48 = vld [vmem:[%s1 + $0x5c] sm:$0xf]
  %v49 = vld [vmem:[%s1 + $0x60] sm:$0xf]
  %v50 = vld [vmem:[%s1 + $0x64] sm:$0xf]
  %v51 = vld [vmem:[%s1 + $0x68] sm:$0xf]
  %v52 = vld [vmem:[%s1 + $0x6c] sm:$0xf]
  %v53 = vld [vmem:[%s1 + $0x70] sm:$0xf]
  %v54 = vld [vmem:[%s1 + $0x74] sm:$0xf]
  %v55 = vld [vmem:[%s1 + $0x78] sm:$0xf]
  %v56 = vld [vmem:[%s1 + $0x7c] sm:$0xf]
  %v57 = vld [vmem:[%s1 + $0x80] sm:$0xf]
  %v58 = vld [vmem:[%s1 + $0x84] sm:$0xf]
  %v59 = vld [vmem:[%s1 + $0x88] sm:$0xf]
  %v60 = vld [vmem:[%s1 + $0x8c] sm:$0xf]
  %v61 = vld [vmem:[%s1 + $0x90] sm:$0xf]
  %v62 = vld [vmem:[%s1 + $0x94] sm:$0xf]
  %v63 = vld [vmem:[%s1 + $0x98] sm:$0xf]
  %v64 = vld [vmem:[%s1 + $0x9c] sm:$0xf]
  %v65 = vld [vmem:[%s1 + $0xa0] sm:$0xf]
  %v66 = vld [vmem:[%s1 + $0xa4] sm:$0xf]
  %v67 = vld [vmem:[%s1 + $0xa8] sm:$0xf]
  %v68 = vld [vmem:[%s1 + $0xac] sm:$0xf]
  %v69 = vld [vmem:[%s1 + $0xb0] sm:$0xf]
  %v70 = vld [vmem:[%s1 + $0xb4] sm:$0xf]
  %v71 = vld [vmem:[%s1 + $0xb8] sm:$0xf]
  %v72 = vld [vmem:[%s1 + $0xbc] sm:$0xf]
  %v73 = vld [vmem:[%s1 + $0xc0] sm:$0xf]
  %v74 = vld [vmem:[%s1 + $0xc4] sm:$0xf]
  %v75 = vld [vmem:[%s1 + $0xc8] sm:$0xf]
  %v76 = vld [vmem:[%s1 + $0xcc] sm:$0xf]
  %v77 = vld [vmem:[%s1 + $0xd0] sm:$0xf]
  %v78 = vld [vmem:[%s1 + $0xd4] sm:$0xf]
  %v79 = vld [vmem:[%s1 + $0xd8] sm:$0xf]
  %v80 = vld [vmem:[%s1 + $0xdc] sm:$0xf]
  %v81 = vld [vmem:[%s1 + $0xe0] sm:$0xf]
  %v82 = vld [vmem:[%s1 + $0xe4] sm:$0xf]
  %v83 = vld [vmem:[%s1 + $0xe8] sm:$0xf]
  %v84 = vld [vmem:[%s1 + $0xec] sm:$0xf]
  %v85 = vld [vmem:[%s1 + $0xf0] sm:$0xf]
  %v86 = vld [vmem:[%s1 + $0xf4] sm:$0xf]
  %v87 = vld [vmem:[%s1 + $0xf8] sm:$0xf]
  %v88 = vld [vmem:[%s1 + $0xfc] sm:$0xf]
  %v89 = vld [vmem:[%s1 + $0x100] sm:$0xf]
  %v90 = vld [vmem:[%s1 + $0x104] sm:$0xf]
  %v91 = vld [vmem:[%s1 + $0x108] sm:$0xf]
  %v92 = vld [vmem:[%s1 + $0x10c] sm:$0xf]
  %v93 = vld [vmem:[%s1 + $0x110] sm:$0xf]
  %v94 = vld [vmem:[%s1 + $0x114] sm:$0xf]
  %v95 = vld [vmem:[%s1 + $0x118] sm:$0xf]
  %v96 = vld [vmem:[%s1 + $0x11c] sm:$0xf]
  %v97 = vld [vmem:[%s1 + $0x120] sm:$0xf]
  %v98 = vld [vmem:[%s1 + $0x124] sm:$0xf]
  %v99 = vld [vmem:[%s1 + $0x128] sm:$0xf]
  %v100 = vld [vmem:[%s1 + $0x12c] sm:$0xf]
  %v101 = vld [vmem:[%s1 + $0x130] sm:$0xf]
  %v102 = vld [vmem:[%s1 + $0x134] sm:$0xf]
  %v103 = vld [vmem:[%s1 + $0x138] sm:$0xf]
  %v104 = vld [vmem:[%s1 + $0x13c] sm:$0xf]
  %v105 = vld [vmem:[%s1 + $0x140] sm:$0xf]
  %v106 = vld [vmem:[%s1 + $0x144] sm:$0xf]
  %v107 = vld [vmem:[%s1 + $0x148] sm:$0xf]
  %v108 = vld [vmem:[%s1 + $0x14c] sm:$0xf]
  %v109 = vld [vmem:[%s1 + $0x150] sm:$0xf]
  %v110 = vld [vmem:[%s1 + $0x154] sm:$0xf]
  %v111 = vld [vmem:[%s1 + $0x158] sm:$0xf]
  %v112 = vld [vmem:[%s1 + $0x15c] sm:$0xf]
  %v113 = vld [vmem:[%s1 + $0x160] sm:$0xf]
  %v114 = vld [vmem:[%s1 + $0x164] sm:$0xf]
  %v115 = vld [vmem:[%s1 + $0x168] sm:$0xf]
  %v116 = vld [vmem:[%s1 + $0x16c] sm:$0xf]
  %v117 = vld [vmem:[%s1 + $0x170] sm:$0xf]
  %v118 = vld [vmem:[%s1 + $0x174] sm:$0xf]
  %v119 = vld [vmem:[%s1 + $0x178] sm:$0xf]
  %v120 = vld [vmem:[%s1 + $0x17c] sm:$0xf]
  %v121 = vld [vmem:[%s1 + $0x180] sm:$0xf]
  %v122 = vld [vmem:[%s1 + $0x184] sm:$0xf]
  %v123 = vld [vmem:[%s1 + $0x188] sm:$0xf]
  %v124 = vld [vmem:[%s1 + $0x18c] sm:$0xf]
  %v125 = vld [vmem:[%s1 + $0x190] sm:$0xf]
  %v126 = vld [vmem:[%s1 + $0x194] sm:$0xf]
  %v127 = vld [vmem:[%s1 + $0x198] sm:$0xf]
  %v128 = vld [vmem:[%s1 + $0x19c] sm:$0xf]
  %v129 = vld [vmem:[%s1 + $0x1a0] sm:$0xf]
  %v130 = vld [vmem:[%s1 + $0x1a4] sm:$0xf]
  %v131 = vld [vmem:[%s1 + $0x1a8] sm:$0xf]
  %v132 = vld [vmem:[%s1 + $0x1ac] sm:$0xf]
  %v133 = vld [vmem:[%s1 + $0x1b0] sm:$0xf]
  %v134 = vld [vmem:[%s1 + $0x1b4] sm:$0xf]
  %v135 = vld [vmem:[%s1 + $0x1b8] sm:$0xf]
  %v136 = vld [vmem:[%s1 + $0x1bc] sm:$0xf]
  %v137 = vld [vmem:[%s1 + $0x1c0] sm:$0xf]
  %v138 = vld [vmem:[%s1 + $0x1c4] sm:$0xf]
  %v139 = vld [vmem:[%s1 + $0x1c8] sm:$0xf]
  %v140 = vld [vmem:[%s1 + $0x1cc] sm:$0xf]
  %v141 = vld [vmem:[%s1 + $0x1d0] sm:$0xf]
  %v142 = vld [vmem:[%s1 + $0x1d4] sm:$0xf]
  %v143 = vld [vmem:[%s1 + $0x1d8] sm:$0xf]
  %v144 = vld [vmem:[%s1 + $0x1dc] sm:$0xf]
  %v145 = vld [vmem:[%s1 + $0x1e0] sm:$0xf]
  %v146 = vld [vmem:[%s1 + $0x1e4] sm:$0xf]
  %v147 = vld [vmem:[%s1 + $0x1e8] sm:$0xf]
  %v148 = vld [vmem:[%s1 + $0x1ec] sm:$0xf]
  %v149 = vld [vmem:[%s1 + $0x1f0] sm:$0xf]
  %v150 = vld [vmem:[%s1 + $0x1f4] sm:$0xf]
  %v151 = vld [vmem:[%s1 + $0x1f8] sm:$0xf]
  %v152 = vld [vmem:[%s1 + $0x1fc] sm:$0xf]
  %v153 = vld [vmem:[%s1 + $0x200] sm:$0xf]
  %v154 = vld [vmem:[%s1 + $0x204] sm:$0xf]
  %v155 = vld [vmem:[%s1 + $0x208] sm:$0xf]
  %v156 = vld [vmem:[%s1 + $0x20c] sm:$0xf]
  %v157 = vld [vmem:[%s1 + $0x210] sm:$0xf]
  %v158 = vld [vmem:[%s1 + $0x214] sm:$0xf]
  %v159 = vld [vmem:[%s1 + $0x218] sm:$0xf]
  %v160 = vld [vmem:[%s1 + $0x21c] sm:$0xf]
  %v161 = vld [vmem:[%s1 + $0x220] sm:$0xf]
  %v162 = vld [vmem:[%s1 + $0x224] sm:$0xf]
  %v163 = vld [vmem:[%s1 + $0x228] sm:$0xf]
  %v164 = vld [vmem:[%s1 + $0x22c] sm:$0xf]
  %v165 = vld [vmem:[%s1 + $0x230] sm:$0xf]
  %v166 = vld [vmem:[%s1 + $0x234] sm:$0xf]
  %v167 = vld [vmem:[%s1 + $0x238] sm:$0xf]
  %v168 = vld [vmem:[%s1 + $0x23c] sm:$0xf]
  %v169 = vld [vmem:[%s2] sm:$0x1]
  %v171 = vlaneseq
  %v172 = vshrl.u32 %v171, 7
  %v173 = vsub.s32 0, %v172
  %v174 = vrot.slane %v169, %v173
  %v186 = vunpack.c.l.b16 %v15
  %v187 = vunpack.c.h.b16 %v15
  %v188 = vunpack.c.l.b16 %v16
  %v189 = vunpack.c.h.b16 %v16
  %v190 = vunpack.c.l.b16 %v17
  %v191 = vunpack.c.h.b16 %v17
  %v192 = vunpack.c.l.b16 %v18
  %v193 = vunpack.c.h.b16 %v18
  %v194 = vunpack.c.l.b16 %v19
  %v195 = vunpack.c.l.b16 %v20
  %v196 = vunpack.c.h.b16 %v20
  %v197 = vunpack.c.l.b16 %v21
  %v198 = vunpack.c.h.b16 %v21
  %v199 = vunpack.c.l.b16 %v22
  %v200 = vunpack.c.h.b16 %v22
  %v201 = vunpack.c.l.b16 %v23
  %v202 = vunpack.c.h.b16 %v23
  %v203 = vunpack.c.l.b16 %v24
  %v204 = vpack.c.b16 %v195, %v186
  %v205 = vpack.c.b16 %v196, %v187
  %v206 = vpack.c.b16 %v197, %v188
  %v207 = vpack.c.b16 %v198, %v189
  %v208 = vpack.c.b16 %v199, %v190
  %v209 = vpack.c.b16 %v200, %v191
  %v210 = vpack.c.b16 %v201, %v192
  %v211 = vpack.c.b16 %v202, %v193
  %v212 = vpack.c.b16 %v203, %v194
  %v366 = vunpack.c.l.b16 %v25
  %v367 = vunpack.c.l.b16 %v26
  %v368 = vunpack.c.l.b16 %v27
  %v369 = vunpack.c.l.b16 %v28
  %v370 = vunpack.c.l.b16 %v29
  %v371 = vunpack.c.l.b16 %v30
  %v372 = vunpack.c.l.b16 %v31
  %v373 = vunpack.c.l.b16 %v32
  %v374 = vunpack.c.l.b16 %v33
  %v375 = vunpack.c.l.b16 %v34
  %v376 = vunpack.c.l.b16 %v35
  %v377 = vunpack.c.l.b16 %v36
  %v378 = vunpack.c.l.b16 %v37
  %v379 = vunpack.c.l.b16 %v38
  %v380 = vunpack.c.l.b16 %v39
  %v381 = vunpack.c.l.b16 %v40
  %v382 = vunpack.c.l.b16 %v41
  %v383 = vunpack.c.l.b16 %v42
  %v384 = vunpack.c.l.b16 %v43
  %v385 = vunpack.c.l.b16 %v44
  %v386 = vunpack.c.l.b16 %v45
  %v387 = vunpack.c.l.b16 %v46
  %v388 = vunpack.c.l.b16 %v47
  %v389 = vunpack.c.l.b16 %v48
  %v390 = vunpack.c.l.b16 %v49
  %v391 = vunpack.c.l.b16 %v50
  %v392 = vunpack.c.l.b16 %v51
  %v393 = vunpack.c.l.b16 %v52
  %v394 = vunpack.c.l.b16 %v53
  %v395 = vunpack.c.l.b16 %v54
  %v396 = vunpack.c.l.b16 %v55
  %v397 = vunpack.c.l.b16 %v56
  %v398 = vunpack.c.l.b16 %v57
  %v399 = vunpack.c.l.b16 %v58
  %v400 = vunpack.c.l.b16 %v59
  %v401 = vunpack.c.l.b16 %v60
  %v402 = vunpack.c.l.b16 %v61
  %v403 = vunpack.c.l.b16 %v62
  %v404 = vunpack.c.l.b16 %v63
  %v405 = vunpack.c.l.b16 %v64
  %v406 = vunpack.c.l.b16 %v65
  %v407 = vunpack.c.l.b16 %v66
  %v408 = vunpack.c.l.b16 %v67
  %v409 = vunpack.c.l.b16 %v68
  %v410 = vunpack.c.l.b16 %v69
  %v411 = vunpack.c.l.b16 %v70
  %v412 = vunpack.c.l.b16 %v71
  %v413 = vunpack.c.l.b16 %v72
  %v414 = vunpack.c.l.b16 %v73
  %v415 = vunpack.c.l.b16 %v74
  %v416 = vunpack.c.l.b16 %v75
  %v417 = vunpack.c.l.b16 %v76
  %v418 = vunpack.c.l.b16 %v77
  %v419 = vunpack.c.l.b16 %v78
  %v420 = vunpack.c.l.b16 %v79
  %v421 = vunpack.c.l.b16 %v80
  %v422 = vunpack.c.l.b16 %v81
  %v423 = vunpack.c.l.b16 %v82
  %v424 = vunpack.c.l.b16 %v83
  %v425 = vunpack.c.l.b16 %v84
  %v426 = vunpack.c.l.b16 %v85
  %v427 = vunpack.c.l.b16 %v86
  %v428 = vunpack.c.l.b16 %v87
  %v429 = vunpack.c.l.b16 %v88
  %v430 = vunpack.c.l.b16 %v89
  %v431 = vunpack.c.l.b16 %v90
  %v432 = vunpack.c.l.b16 %v91
  %v433 = vunpack.c.l.b16 %v92
  %v434 = vunpack.c.l.b16 %v93
  %v435 = vunpack.c.l.b16 %v94
  %v436 = vunpack.c.l.b16 %v95
  %v437 = vunpack.c.l.b16 %v96
  %v438 = vunpack.c.l.b16 %v97
  %v439 = vunpack.c.l.b16 %v98
  %v440 = vunpack.c.l.b16 %v99
  %v441 = vunpack.c.l.b16 %v100
  %v442 = vunpack.c.l.b16 %v101
  %v443 = vunpack.c.l.b16 %v102
  %v444 = vunpack.c.l.b16 %v103
  %v445 = vunpack.c.l.b16 %v104
  %v446 = vunpack.c.l.b16 %v105
  %v447 = vunpack.c.l.b16 %v106
  %v448 = vunpack.c.l.b16 %v107
  %v449 = vunpack.c.l.b16 %v108
  %v450 = vunpack.c.l.b16 %v109
  %v451 = vunpack.c.l.b16 %v110
  %v452 = vunpack.c.l.b16 %v111
  %v453 = vunpack.c.l.b16 %v112
  %v454 = vunpack.c.l.b16 %v113
  %v455 = vunpack.c.l.b16 %v114
  %v456 = vunpack.c.l.b16 %v115
  %v457 = vunpack.c.l.b16 %v116
  %v458 = vunpack.c.l.b16 %v117
  %v459 = vunpack.c.l.b16 %v118
  %v460 = vunpack.c.l.b16 %v119
  %v461 = vunpack.c.l.b16 %v120
  %v462 = vunpack.c.l.b16 %v121
  %v463 = vunpack.c.l.b16 %v122
  %v464 = vunpack.c.l.b16 %v123
  %v465 = vunpack.c.l.b16 %v124
  %v466 = vunpack.c.l.b16 %v125
  %v467 = vunpack.c.l.b16 %v126
  %v468 = vunpack.c.l.b16 %v127
  %v469 = vunpack.c.l.b16 %v128
  %v470 = vunpack.c.l.b16 %v129
  %v471 = vunpack.c.l.b16 %v130
  %v472 = vunpack.c.l.b16 %v131
  %v473 = vunpack.c.l.b16 %v132
  %v474 = vunpack.c.l.b16 %v133
  %v475 = vunpack.c.l.b16 %v134
  %v476 = vunpack.c.l.b16 %v135
  %v477 = vunpack.c.l.b16 %v136
  %v478 = vunpack.c.l.b16 %v137
  %v479 = vunpack.c.l.b16 %v138
  %v480 = vunpack.c.l.b16 %v139
  %v481 = vunpack.c.l.b16 %v140
  %v482 = vunpack.c.l.b16 %v141
  %v483 = vunpack.c.l.b16 %v142
  %v484 = vunpack.c.l.b16 %v143
  %v485 = vunpack.c.l.b16 %v144
  %v486 = vunpack.c.l.b16 %v145
  %v487 = vunpack.c.l.b16 %v146
  %v488 = vunpack.c.l.b16 %v147
  %v489 = vunpack.c.l.b16 %v148
  %v490 = vunpack.c.l.b16 %v149
  %v491 = vunpack.c.l.b16 %v150
  %v492 = vunpack.c.l.b16 %v151
  %v493 = vunpack.c.l.b16 %v152
  %v494 = vunpack.c.l.b16 %v153
  %v495 = vunpack.c.l.b16 %v154
  %v496 = vunpack.c.l.b16 %v155
  %v497 = vunpack.c.l.b16 %v156
  %v498 = vunpack.c.l.b16 %v157
  %v499 = vunpack.c.l.b16 %v158
  %v500 = vunpack.c.l.b16 %v159
  %v501 = vunpack.c.l.b16 %v160
  %v502 = vunpack.c.l.b16 %v161
  %v503 = vunpack.c.l.b16 %v162
  %v504 = vunpack.c.l.b16 %v163
  %v505 = vunpack.c.l.b16 %v164
  %v506 = vunpack.c.l.b16 %v165
  %v507 = vunpack.c.l.b16 %v166
  %v508 = vunpack.c.l.b16 %v167
  %v509 = vunpack.c.l.b16 %v168
  %v510 = vpack.c.b16 %v367, %v366
  %v511 = vpack.c.b16 %v369, %v368
  %v512 = vpack.c.b16 %v371, %v370
  %v513 = vpack.c.b16 %v373, %v372
  %v514 = vpack.c.b16 %v375, %v374
  %v515 = vpack.c.b16 %v377, %v376
  %v516 = vpack.c.b16 %v379, %v378
  %v517 = vpack.c.b16 %v381, %v380
  %v518 = vpack.c.b16 %v383, %v382
  %v519 = vpack.c.b16 %v385, %v384
  %v520 = vpack.c.b16 %v387, %v386
  %v521 = vpack.c.b16 %v389, %v388
  %v522 = vpack.c.b16 %v391, %v390
  %v523 = vpack.c.b16 %v393, %v392
  %v524 = vpack.c.b16 %v395, %v394
  %v525 = vpack.c.b16 %v397, %v396
  %v526 = vpack.c.b16 %v399, %v398
  %v527 = vpack.c.b16 %v401, %v400
  %v528 = vpack.c.b16 %v403, %v402
  %v529 = vpack.c.b16 %v405, %v404
  %v530 = vpack.c.b16 %v407, %v406
  %v531 = vpack.c.b16 %v409, %v408
  %v532 = vpack.c.b16 %v411, %v410
  %v533 = vpack.c.b16 %v413, %v412
  %v534 = vpack.c.b16 %v415, %v414
  %v535 = vpack.c.b16 %v417, %v416
  %v536 = vpack.c.b16 %v419, %v418
  %v537 = vpack.c.b16 %v421, %v420
  %v538 = vpack.c.b16 %v423, %v422
  %v539 = vpack.c.b16 %v425, %v424
  %v540 = vpack.c.b16 %v427, %v426
  %v541 = vpack.c.b16 %v429, %v428
  %v542 = vpack.c.b16 %v431, %v430
  %v543 = vpack.c.b16 %v433, %v432
  %v544 = vpack.c.b16 %v435, %v434
  %v545 = vpack.c.b16 %v437, %v436
  %v546 = vpack.c.b16 %v439, %v438
  %v547 = vpack.c.b16 %v441, %v440
  %v548 = vpack.c.b16 %v443, %v442
  %v549 = vpack.c.b16 %v445, %v444
  %v550 = vpack.c.b16 %v447, %v446
  %v551 = vpack.c.b16 %v449, %v448
  %v552 = vpack.c.b16 %v451, %v450
  %v553 = vpack.c.b16 %v453, %v452
  %v554 = vpack.c.b16 %v455, %v454
  %v555 = vpack.c.b16 %v457, %v456
  %v556 = vpack.c.b16 %v459, %v458
  %v557 = vpack.c.b16 %v461, %v460
  %v558 = vpack.c.b16 %v463, %v462
  %v559 = vpack.c.b16 %v465, %v464
  %v560 = vpack.c.b16 %v467, %v466
  %v561 = vpack.c.b16 %v469, %v468
  %v562 = vpack.c.b16 %v471, %v470
  %v563 = vpack.c.b16 %v473, %v472
  %v564 = vpack.c.b16 %v475, %v474
  %v565 = vpack.c.b16 %v477, %v476
  %v566 = vpack.c.b16 %v479, %v478
  %v567 = vpack.c.b16 %v481, %v480
  %v568 = vpack.c.b16 %v483, %v482
  %v569 = vpack.c.b16 %v485, %v484
  %v570 = vpack.c.b16 %v487, %v486
  %v571 = vpack.c.b16 %v489, %v488
  %v572 = vpack.c.b16 %v491, %v490
  %v573 = vpack.c.b16 %v493, %v492
  %v574 = vpack.c.b16 %v495, %v494
  %v575 = vpack.c.b16 %v497, %v496
  %v576 = vpack.c.b16 %v499, %v498
  %v577 = vpack.c.b16 %v501, %v500
  %v578 = vpack.c.b16 %v503, %v502
  %v579 = vpack.c.b16 %v505, %v504
  %v580 = vpack.c.b16 %v507, %v506
  %v581 = vpack.c.b16 %v509, %v508
  %654 = vmatprep.subr.bf16.mxu0 0
  %655 = vmatpush1.bf16.msra.mxu0 %v510
  %656 = vmatprep.subr.bf16.mxu0 0
  %657 = vmatpush1.bf16.msra.mxu0 %v511
  %658 = vmatprep.subr.bf16.mxu0 0
  %659 = vmatpush1.bf16.msra.mxu0 %v512
  %660 = vmatprep.subr.bf16.mxu0 0
  %661 = vmatpush1.bf16.msra.mxu0 %v513
  %662 = vmatprep.subr.bf16.mxu0 0
  %663 = vmatpush1.bf16.msra.mxu0 %v514
  %664 = vmatprep.subr.bf16.mxu0 0
  %665 = vmatpush1.bf16.msra.mxu0 %v515
  %666 = vmatprep.subr.bf16.mxu0 0
  %667 = vmatpush1.bf16.msra.mxu0 %v516
  %668 = vmatprep.subr.bf16.mxu0 0
  %669 = vmatpush1.bf16.msra.mxu0 %v517
  %670 = vmatprep.subr.bf16.mxu0 0
  %671 = vmatpush1.bf16.msra.mxu0 %v518
  %672 = vmatprep.subr.bf16.mxu0 0
  %673 = vmatpush1.bf16.msra.mxu0 %v519
  %674 = vmatprep.subr.bf16.mxu0 0
  %675 = vmatpush1.bf16.msra.mxu0 %v520
  %676 = vmatprep.subr.bf16.mxu0 0
  %677 = vmatpush1.bf16.msra.mxu0 %v521
  %678 = vmatprep.subr.bf16.mxu0 0
  %679 = vmatpush1.bf16.msra.mxu0 %v522
  %680 = vmatprep.subr.bf16.mxu0 0
  %681 = vmatpush1.bf16.msra.mxu0 %v523
  %682 = vmatprep.subr.bf16.mxu0 0
  %683 = vmatpush1.bf16.msra.mxu0 %v524
  %684 = vmatprep.subr.bf16.mxu0 0
  %685 = vmatpush1.bf16.msra.mxu0 %v525
  %686 = vmatprep.mubr.bf16.mxu0 %v205
  %687 = vmatmul.mubr.bf16.gmra.mrb[0].mxu0 %v204
  %v688 = vpop.f32.mrb[0].mxu0
  %v689 = vadd.f32 %v174, %v688
  %v690 = vpop.f32.mrb[0].mxu0
  %v691 = vpop.f32.mrb[0].mxu0
  %v692 = vadd.f32 %v174, %v691
  %v693 = vpop.f32.mrb[0].mxu0
  %694 = vdwg.mxu0
  %695 = vmatprep.subr.bf16.mxu0 0
  %696 = vmatpush1.bf16.msra.mxu0 %v526
  %697 = vmatprep.subr.bf16.mxu0 0
  %698 = vmatpush1.bf16.msra.mxu0 %v527
  %699 = vmatprep.subr.bf16.mxu0 0
  %700 = vmatpush1.bf16.msra.mxu0 %v528
  %701 = vmatprep.subr.bf16.mxu0 0
  %702 = vmatpush1.bf16.msra.mxu0 %v529
  %703 = vmatprep.subr.bf16.mxu0 0
  %704 = vmatpush1.bf16.msra.mxu0 %v530
  %705 = vmatprep.subr.bf16.mxu0 0
  %706 = vmatpush1.bf16.msra.mxu0 %v531
  %707 = vmatprep.subr.bf16.mxu0 0
  %708 = vmatpush1.bf16.msra.mxu0 %v532
  %709 = vmatprep.subr.bf16.mxu0 0
  %710 = vmatpush1.bf16.msra.mxu0 %v533
  %711 = vmatprep.subr.bf16.mxu0 0
  %712 = vmatpush1.bf16.msra.mxu0 %v534
  %713 = vmatprep.subr.bf16.mxu0 0
  %714 = vmatpush1.bf16.msra.mxu0 %v535
  %715 = vmatprep.subr.bf16.mxu0 0
  %716 = vmatpush1.bf16.msra.mxu0 %v536
  %717 = vmatprep.subr.bf16.mxu0 0
  %718 = vmatpush1.bf16.msra.mxu0 %v537
  %719 = vmatprep.subr.bf16.mxu0 0
  %720 = vmatpush1.bf16.msra.mxu0 %v538
  %721 = vmatprep.subr.bf16.mxu0 0
  %722 = vmatpush1.bf16.msra.mxu0 %v539
  %723 = vmatprep.subr.bf16.mxu0 0
  %724 = vmatpush1.bf16.msra.mxu0 %v540
  %725 = vmatprep.subr.bf16.mxu0 0
  %726 = vmatpush1.bf16.msra.mxu0 %v541
  %727 = vmatprep.mubr.bf16.mxu0 %v207
  %728 = vmatmul.mubr.bf16.gmra.mrb[0].mxu0 %v206
  %v729 = vpop.f32.mrb[0].mxu0
  %v730 = vadd.f32 %v689, %v729
  %v731 = vpop.f32.mrb[0].mxu0
  %v732 = vpop.f32.mrb[0].mxu0
  %v733 = vadd.f32 %v692, %v732
  %v734 = vpop.f32.mrb[0].mxu0
  %735 = vdwg.mxu0
  %736 = vmatprep.subr.bf16.mxu0 0
  %737 = vmatpush1.bf16.msra.mxu0 %v542
  %738 = vmatprep.subr.bf16.mxu0 0
  %739 = vmatpush1.bf16.msra.mxu0 %v543
  %740 = vmatprep.subr.bf16.mxu0 0
  %741 = vmatpush1.bf16.msra.mxu0 %v544
  %742 = vmatprep.subr.bf16.mxu0 0
  %743 = vmatpush1.bf16.msra.mxu0 %v545
  %744 = vmatprep.subr.bf16.mxu0 0
  %745 = vmatpush1.bf16.msra.mxu0 %v546
  %746 = vmatprep.subr.bf16.mxu0 0
  %747 = vmatpush1.bf16.msra.mxu0 %v547
  %748 = vmatprep.subr.bf16.mxu0 0
  %749 = vmatpush1.bf16.msra.mxu0 %v548
  %750 = vmatprep.subr.bf16.mxu0 0
  %751 = vmatpush1.bf16.msra.mxu0 %v549
  %752 = vmatprep.subr.bf16.mxu0 0
  %753 = vmatpush1.bf16.msra.mxu0 %v550
  %754 = vmatprep.subr.bf16.mxu0 0
  %755 = vmatpush1.bf16.msra.mxu0 %v551
  %756 = vmatprep.subr.bf16.mxu0 0
  %757 = vmatpush1.bf16.msra.mxu0 %v552
  %758 = vmatprep.subr.bf16.mxu0 0
  %759 = vmatpush1.bf16.msra.mxu0 %v553
  %760 = vmatprep.subr.bf16.mxu0 0
  %761 = vmatpush1.bf16.msra.mxu0 %v554
  %762 = vmatprep.subr.bf16.mxu0 0
  %763 = vmatpush1.bf16.msra.mxu0 %v555
  %764 = vmatprep.subr.bf16.mxu0 0
  %765 = vmatpush1.bf16.msra.mxu0 %v556
  %766 = vmatprep.subr.bf16.mxu0 0
  %767 = vmatpush1.bf16.msra.mxu0 %v557
  %768 = vmatprep.mubr.bf16.mxu0 %v209
  %769 = vmatmul.mubr.bf16.gmra.mrb[0].mxu0 %v208
  %v770 = vpop.f32.mrb[0].mxu0
  %v771 = vadd.f32 %v730, %v770
  %v772 = vpop.f32.mrb[0].mxu0
  %v773 = vpop.f32.mrb[0].mxu0
  %v774 = vadd.f32 %v733, %v773
  %v775 = vpop.f32.mrb[0].mxu0
  %776 = vdwg.mxu0
  %777 = vmatprep.subr.bf16.mxu0 0
  %778 = vmatpush1.bf16.msra.mxu0 %v558
  %779 = vmatprep.subr.bf16.mxu0 0
  %780 = vmatpush1.bf16.msra.mxu0 %v559
  %781 = vmatprep.subr.bf16.mxu0 0
  %782 = vmatpush1.bf16.msra.mxu0 %v560
  %783 = vmatprep.subr.bf16.mxu0 0
  %784 = vmatpush1.bf16.msra.mxu0 %v561
  %785 = vmatprep.subr.bf16.mxu0 0
  %786 = vmatpush1.bf16.msra.mxu0 %v562
  %787 = vmatprep.subr.bf16.mxu0 0
  %788 = vmatpush1.bf16.msra.mxu0 %v563
  %789 = vmatprep.subr.bf16.mxu0 0
  %790 = vmatpush1.bf16.msra.mxu0 %v564
  %791 = vmatprep.subr.bf16.mxu0 0
  %792 = vmatpush1.bf16.msra.mxu0 %v565
  %793 = vmatprep.subr.bf16.mxu0 0
  %794 = vmatpush1.bf16.msra.mxu0 %v566
  %795 = vmatprep.subr.bf16.mxu0 0
  %796 = vmatpush1.bf16.msra.mxu0 %v567
  %797 = vmatprep.subr.bf16.mxu0 0
  %798 = vmatpush1.bf16.msra.mxu0 %v568
  %799 = vmatprep.subr.bf16.mxu0 0
  %800 = vmatpush1.bf16.msra.mxu0 %v569
  %801 = vmatprep.subr.bf16.mxu0 0
  %802 = vmatpush1.bf16.msra.mxu0 %v570
  %803 = vmatprep.subr.bf16.mxu0 0
  %804 = vmatpush1.bf16.msra.mxu0 %v571
  %805 = vmatprep.subr.bf16.mxu0 0
  %806 = vmatpush1.bf16.msra.mxu0 %v572
  %807 = vmatprep.subr.bf16.mxu0 0
  %808 = vmatpush1.bf16.msra.mxu0 %v573
  %809 = vmatprep.mubr.bf16.mxu0 %v211
  %810 = vmatmul.mubr.bf16.gmra.mrb[0].mxu0 %v210
  %v811 = vpop.f32.mrb[0].mxu0
  %v812 = vadd.f32 %v771, %v811
  %v813 = vpop.f32.mrb[0].mxu0
  %v814 = vpop.f32.mrb[0].mxu0
  %v815 = vadd.f32 %v774, %v814
  %v816 = vpop.f32.mrb[0].mxu0
  %817 = vdwg.mxu0
  %818 = vmatprep.subr.bf16.mxu0 0
  %819 = vmatpush1.bf16.msra.mxu0 %v574
  %820 = vmatprep.subr.bf16.mxu0 0
  %821 = vmatpush1.bf16.msra.mxu0 %v575
  %822 = vmatprep.subr.bf16.mxu0 0
  %823 = vmatpush1.bf16.msra.mxu0 %v576
  %824 = vmatprep.subr.bf16.mxu0 0
  %825 = vmatpush1.bf16.msra.mxu0 %v577
  %826 = vmatprep.subr.bf16.mxu0 0
  %827 = vmatpush1.bf16.msra.mxu0 %v578
  %828 = vmatprep.subr.bf16.mxu0 0
  %829 = vmatpush1.bf16.msra.mxu0 %v579
  %830 = vmatprep.subr.bf16.mxu0 0
  %831 = vmatpush1.bf16.msra.mxu0 %v580
  %832 = vmatprep.subr.bf16.mxu0 0
  %833 = vmatpush1.bf16.msra.mxu0 %v581
  %834 = vmatprep.subr.bf16.mxu0 0
  %835 = vmatpush1.bf16.msra.mxu0 0
  %836 = vmatprep.subr.bf16.mxu0 0
  %837 = vmatpush1.bf16.msra.mxu0 0
  %838 = vmatprep.subr.bf16.mxu0 0
  %839 = vmatpush1.bf16.msra.mxu0 0
  %840 = vmatprep.subr.bf16.mxu0 0
  %841 = vmatpush1.bf16.msra.mxu0 0
  %842 = vmatprep.subr.bf16.mxu0 0
  %843 = vmatpush1.bf16.msra.mxu0 0
  %844 = vmatprep.subr.bf16.mxu0 0
  %845 = vmatpush1.bf16.msra.mxu0 0
  %846 = vmatprep.subr.bf16.mxu0 0
  %847 = vmatpush1.bf16.msra.mxu0 0
  %848 = vmatprep.subr.bf16.mxu0 0
  %849 = vmatpush1.bf16.msra.mxu0 0
  %850 = vmatprep.mubr.bf16.mxu0 0
  %851 = vmatmul.mubr.bf16.gmra.mrb[0].mxu0 %v212
  %v852 = vpop.f32.mrb[0].mxu0
  %v853 = vadd.f32 %v812, %v852
  %v854 = vpop.f32.mrb[0].mxu0
  %v855 = vpop.f32.mrb[0].mxu0
  %v856 = vadd.f32 %v815, %v855
  %v857 = vpop.f32.mrb[0].mxu0
  %858 = vdwg.mxu0
  %v859 = vmax.f32 %v853, 0.0
  %v860 = vmax.f32 %v856, 0.0
  %861 = vst [vmem:[%s3] sm:$0xff] %v859
  %862 = vst [vmem:[%s3 + $0x8] sm:$0xff] %v860
  // Predicated region
  $region14: #{classifier_forward.1} parent=0 // pred_check
    _
  $region15: #{classifier_forward.1} parent=0 // pred_check_branch
    %864 = sbr.rel (0) target = $region17
  $region16: #{classifier_forward.1} parent=0 // pred_region
    _
  $region17: #{classifier_forward.1} parent=0 // pred_fallthru
    _
  // Predicated region
  $region18: #{classifier_forward.1} parent=0 // pred_check
    _
  $region19: #{classifier_forward.1} parent=0 // pred_check_branch
    %866 = sbr.rel (0) target = $region21
  $region20: #{classifier_forward.1} parent=0 // pred_region
    _
  $region21: #{classifier_forward.1} parent=0 // pred_fallthru
    _

</llo_original>
